<compile_context>
chip_gen: v7x
topology: tpu7x:2x2x1
jax: 0.10.0
libtpu: 0.0.40
codegen_flags: <defaults>
</compile_context>

<pallas_src>
import jax
import jax.numpy as jnp
from jax.experimental import pallas as pl
from jax.experimental.pallas import tpu as pltpu

_LANES = 128
# ~4 MiB of padded VMEM per block buffer; with 1 input + 1 output, each
# double-buffered, that is 4 buffers => ~16 MiB of scoped VMEM.
_TARGET_BLOCK_BYTES = 4 * 1024 * 1024
# Explicit scoped-VMEM limit: covers v5e's 16 MiB default and stays within
# v7x's 32 MiB default scoped / 64 MiB physical VMEM.
_VMEM_LIMIT_BYTES = 32 * 1024 * 1024


def _copy_kernel(x_ref, o_ref):
    # Identity: copy the current tile through VMEM.
    o_ref[...] = x_ref[...]


def _round_up(x, m):
    return ((x + m - 1) // m) * m


def _call_copy(x2, block_shape, grid, index_map, bytes_accessed):
    """Single tiled pallas_call copying x2 (2-D) to a fresh output."""
    return pl.pallas_call(
        _copy_kernel,
        out_shape=jax.ShapeDtypeStruct(x2.shape, x2.dtype),
        grid=grid,
        in_specs=[pl.BlockSpec(block_shape, index_map)],
        out_specs=pl.BlockSpec(block_shape, index_map),
        compiler_params=pltpu.CompilerParams(
            dimension_semantics=("parallel",) * len(grid),
            vmem_limit_bytes=_VMEM_LIMIT_BYTES,
        ),
        cost_estimate=pl.CostEstimate(
            flops=0, transcendentals=0, bytes_accessed=bytes_accessed
        ),
    )(x2)


def _row_block(rows, cols, itemsize):
    """Largest multiple-of-8 row block whose padded VMEM tile fits the budget."""
    cols_padded = _round_up(cols, _LANES)          # lane padding in VMEM
    target_rows = max(8, (_TARGET_BLOCK_BYTES // (cols_padded * itemsize)) // 8 * 8)
    # Full extent is always a legal block, even when not a multiple of 8.
    return rows if rows <= target_rows else target_rows


def _pallas_identity_copy(x):
    """Materialized identity: kernel is the only HBM mover (no pad, no slice)."""
    total = x.size
    if total == 0:
        return x  # empty array: nothing to copy

    orig_shape = x.shape
    itemsize = jnp.dtype(x.dtype).itemsize
    bytes_accessed = 2 * total * itemsize

    if total % _LANES == 0:
        # Preferred path: lane-dense (rows, 128) layout -> unmasked stores.
        rows = total // _LANES
        x2 = x.reshape(rows, _LANES)               # metadata-only
        block_rows = _row_block(rows, _LANES, itemsize)
        out = _call_copy(
            x2, (block_rows, _LANES), (pl.cdiv(rows, block_rows),),
            lambda i: (i, 0), bytes_accessed)
        return out.reshape(orig_shape)

    if x.ndim >= 2 and _round_up(x.shape[-1], _LANES) * itemsize * 8 <= _TARGET_BLOCK_BYTES:
        # Ragged last dim: keep it as the (full-extent) lane dim and tile rows.
        # Only this path takes masked stores, and only because the data itself
        # is not 128-aligned — still no extra HBM traffic.
        cols = x.shape[-1]
        rows = total // cols
        x2 = x.reshape(rows, cols)                 # metadata-only
        block_rows = _row_block(rows, cols, itemsize)
        out = _call_copy(
            x2, (block_rows, cols), (pl.cdiv(rows, block_rows),),
            lambda i: (i, 0), bytes_accessed)
        return out.reshape(orig_shape)

    # Last resort (1-D / scalar / huge ragged last dim): single-sublane column
    # tiling.  block_cols is a multiple of 128 unless the whole array fits.
    x2 = x.reshape(1, total)
    max_cols = _LANES * 1024                       # padded tile <= 8*128K*itemsize
    block_cols = total if total <= max_cols else max_cols
    out = _call_copy(
        x2, (1, block_cols), (pl.cdiv(total, block_cols),),
        lambda i: (0, i), bytes_accessed)
    return out.reshape(orig_shape)


def noop_forward(x, use_pallas=False):
    """NoOpModule.forward(x) -> x.

    Default (use_pallas=False): return x directly — the identity needs no HBM
    traffic at all (recommended production path).
    use_pallas=True: route through the tiled Pallas copy kernel above.
    """
    if not use_pallas:
        return x
    return _pallas_identity_copy(x)


def noop_penalty():
    # NoOpModule.penalty() -> 0 (no parameters, nothing to compute).
    return 0


if __name__ == "__main__":
    key = jax.random.PRNGKey(0)

    # Canonical small NCHW-style input: batch=2, channels=4, spatial=16.
    x = jax.random.normal(key, (2, 4, 16, 16), dtype=jnp.float32)

    # Recommended production path: pure identity, zero HBM traffic.
    y_fast = jax.block_until_ready(noop_forward(x))
    assert y_fast.shape == x.shape and y_fast.dtype == x.dtype
    assert jnp.array_equal(y_fast, x)

    # Pallas copy path: 2048 elems -> lane-dense (16, 128), single block.
    y_kernel = jax.block_until_ready(noop_forward(x, use_pallas=True))
    assert y_kernel.shape == x.shape and y_kernel.dtype == x.dtype
    assert jnp.array_equal(y_kernel, x)

    # Ragged path: 1155 elems (not a multiple of 128) -> no pad/slice; the
    # kernel takes a full-extent (105, 11) block with masked stores.
    x_odd = jax.random.normal(jax.random.PRNGKey(1), (3, 5, 7, 11), dtype=jnp.float32)
    y_odd = jax.block_until_ready(noop_forward(x_odd, use_pallas=True))
    assert y_odd.shape == x_odd.shape and jnp.array_equal(y_odd, x_odd)

    # Multi-block grid with a partial last block: 1,572,864 elems -> 12288
    # lane-dense rows -> grid=(2,) of (8192, 128) tiles, second tile ragged.
    x_big = jax.random.normal(jax.random.PRNGKey(2), (2, 8, 768, 128), dtype=jnp.float32)
    y_big = jax.block_until_ready(noop_forward(x_big, use_pallas=True))
    assert y_big.shape == x_big.shape and jnp.array_equal(y_big, x_big)

    # Different dtype (bf16) through the same path.
    x_bf16 = x.astype(jnp.bfloat16)
    y_bf16 = jax.block_until_ready(noop_forward(x_bf16, use_pallas=True))
    assert y_bf16.dtype == jnp.bfloat16 and jnp.array_equal(y_bf16, x_bf16)

    assert noop_penalty() == 0

    print("KERNEL_OK")
</pallas_src>

<mosaic_0001>
module attributes {stable_mosaic.version = 11 : i64} {
  func.func @_copy_kernel(%arg0: i32, %arg1: memref<16x128xf32, #tpu.memory_space<vmem>>, %arg2: memref<16x128xf32, #tpu.memory_space<vmem>>) attributes {dimension_semantics = [#tpu.dimension_semantics<parallel>], iteration_bounds = array<i64: 1>, scalar_prefetch = 0 : i64, scratch_operands = 0 : i64, tpu.core_type = #tpu.core_type<tc>, window_params = [{transform_indices = @transform_0, window_bounds = array<i64: 16, 128>}, {transform_indices = @transform_1, window_bounds = array<i64: 16, 128>}]} {
    %c0 = arith.constant 0 : index
    %c0_0 = arith.constant 0 : index
    %0 = vector.load %arg1[%c0, %c0_0] : memref<16x128xf32, #tpu.memory_space<vmem>>, vector<16x128xf32>
    %c0_1 = arith.constant 0 : index
    %c0_2 = arith.constant 0 : index
    %1 = vector.load %arg2[%c0_1, %c0_2] : memref<16x128xf32, #tpu.memory_space<vmem>>, vector<16x128xf32>
    tpu.vector_store %arg2[%c0_1, %c0_2], %0 {strides = array<i32>} : memref<16x128xf32, #tpu.memory_space<vmem>>, vector<16x128xf32>,
    return
  }
  func.func @transform_0(%arg0: i32) -> (i32, i32) {
    %c0_i32 = arith.constant 0 : i32
    %c0_i32_0 = arith.constant 0 : i32
    return %arg0, %c0_i32 : i32, i32
  }
  func.func @transform_1(%arg0: i32) -> (i32, i32) {
    %c0_i32 = arith.constant 0 : i32
    %c0_i32_0 = arith.constant 0 : i32
    return %arg0, %c0_i32 : i32, i32
  }
}

</mosaic_0001>

<llo_original>
// kernel: tpu_custom_call.1
$region0: #{tpu_custom_call.1}
  #allocation0 [shape = 'u32[]', space=smem, size = 0x4, offset = 0x4, fixed_abs, tag = 'smem constant byte address 0x4 - core index']
  #allocation1 [shape = 'u32[144,128]{1,0:T(1,128)}', space=vmem, size = 0x12000, scoped, tag = 'internal scratch']
  %s0 = inlined_call_operand.hbm [shape: f32[16,128], index: 0, kind: input, shape index: {}]
  %s1 = inlined_call_operand.hbm [shape: f32[16,128], index: 1, kind: output, shape index: {}]
  %s2 = sld [smem:[#allocation0]]
  $region18: #{tpu_custom_call.1} parent=0
    _
  %s4 = ssub.s32 1, %s2
  %s5 = scalar_select 0, %s4, %s2
  $region1: #{tpu_custom_call.1} parent=0
    #allocation2 [shape = 'u8[8192]{0}', space=vmem, size = 0x2000, scoped, tag = 'input window, operand 0, single buffered']
    #allocation3 [shape = 's32[1]{0}', space=sflag, size = 0x4, scoped, tag = 'scoped memory for tpu_custom_call.1']
    #allocation4 [shape = 's32[1]{0}', space=sflag, size = 0x4, scoped, tag = 'scoped memory for tpu_custom_call.1']
    #allocation5 [shape = 'u8[8192]{0}', space=vmem, size = 0x2000, scoped, tag = 'output window, operand 0, single buffered']
    %6 = vsyncpa [#allocation3], 0
    %7 = vsyncpa [#allocation4], 0
    // Predicated region
    $region2: #{tpu_custom_call.1} parent=1 // pred_check
      _
    $region3: #{tpu_custom_call.1} parent=1 // pred_check_branch
      %9 = sbr.rel (0) target = $region5
    $region4: #{tpu_custom_call.1} parent=1 // pred_region
      %s11 = ssub.s32 256, 256
      %12 = vsyncadd [#allocation3], %s11
      %s13 = sshll.u32 [#allocation2], 4
      %s14 = int_to_ptr.vmem [resolvable:$true] %s13
      %19 = dma.hbm_to_vmem [thread:$0]  %s0, 256, %s14, [#allocation3], 128, 128, 8
    $region5: #{tpu_custom_call.1} parent=1 // pred_fallthru
      _
    // Predicated region
    $region6: #{tpu_custom_call.1} parent=1 // pred_check
      _
    $region7: #{tpu_custom_call.1} parent=1 // pred_check_branch
      %21 = sbr.rel (0) target = $region9
    $region8: #{tpu_custom_call.1} parent=1 // pred_region
      %22 = dma.done [#allocation3], 256
    $region9: #{tpu_custom_call.1} parent=1 // pred_fallthru
      _
    %v23 = vld [vmem:[#allocation2] sm:$0xff]
    %v24 = vld [vmem:[#allocation2 + $0x8] sm:$0xff]
    %25 = vst [vmem:[#allocation5] sm:$0xff] %v23
    %26 = vst [vmem:[#allocation5 + $0x8] sm:$0xff] %v24
    // Predicated region
    $region10: #{tpu_custom_call.1} parent=1 // pred_check
      _
    $region11: #{tpu_custom_call.1} parent=1 // pred_check_branch
      %28 = sbr.rel (0) target = $region13
    $region12: #{tpu_custom_call.1} parent=1 // pred_region
      %s30 = ssub.s32 256, 256
      %31 = vsyncadd [#allocation4], %s30
      %s32 = sshll.u32 [#allocation5], 4
      %s33 = int_to_ptr.vmem [resolvable:$true] %s32
      %38 = dma.vmem_to_hbm [thread:$0]  %s33, 256, %s1, [#allocation4], 128, 128, 8
    $region13: #{tpu_custom_call.1} parent=1 // pred_fallthru
      _
    // Predicated region
    $region14: #{tpu_custom_call.1} parent=1 // pred_check
      _
    $region15: #{tpu_custom_call.1} parent=1 // pred_check_branch
      %40 = sbr.rel (0) target = $region17
    $region16: #{tpu_custom_call.1} parent=1 // pred_region
      %41 = dma.done [#allocation4], 256
    $region17: #{tpu_custom_call.1} parent=1 // pred_fallthru
      _
    %42 = vsyncpa [#allocation3], 1
    %43 = vsyncpa [#allocation4], 1

</llo_original>
